<compile_context>
chip_gen: v6e
topology: v6e:2x2x1
jax: 0.10.0
libtpu: 0.0.40
codegen_flags: <defaults>
</compile_context>

<pallas_src>
import functools
import math

import jax
import jax.numpy as jnp
import numpy as np
from jax.experimental import pallas as pl
from jax.experimental.pallas import tpu as pltpu

_VMEM_LIMIT_BYTES = 48 * 2**20


def _ceil_to(x, m):
    return -(-x // m) * m


def _pick_block_rows(n_rows, row_bytes, *, sub=8, target_bytes=4 * 2**20, min_blocks=2):
    """Rows per grid block: multiple of `sub`, ~target_bytes of VMEM per buffer,
    capped so the 1-D 'parallel' grid has at least `min_blocks` steps when possible."""
    if n_rows <= sub:
        return n_rows                       # single block; row dim equals full array dim
    br = max(sub, (int(target_bytes) // int(row_bytes)) // sub * sub)
    cap = max(sub, _ceil_to(-(-n_rows // min_blocks), sub))
    return min(br, cap)


def _compute_light(normals, params, *, clamp):
    """Per-face / per-vertex light color (plain XLA prologue; tiny vs. textures)."""
    ca = jnp.asarray(params['color_ambient'], jnp.float32)
    cd = jnp.asarray(params['color_directional'], jnp.float32)
    d = jnp.asarray(params['direction'], jnp.float32)
    cosine = jnp.maximum(jnp.sum(normals.astype(jnp.float32) * d, axis=-1), 0.0)
    light = (jnp.float32(params['intensity_ambient']) * ca
             + jnp.float32(params['intensity_directional']) * cd * cosine[..., None])
    if clamp:
        light = jnp.clip(light, 0.0, 1.0)
    return light  # (..., 3) float32


def _expand_matrix(g, T):
    """0/1 matrix E (g*3, g*T*3): (light_row @ E)[p] = light_row[(p // (T*3))*3 + p%3]."""
    L = g * T * 3
    p = np.arange(L)
    idx = (p // (T * 3)) * 3 + (p % 3)
    E = np.zeros((g * 3, L), np.float32)
    E[idx, p] = 1.0
    return jnp.asarray(E)


# ----------------------------------------------------------------------------
# Kernels
# ----------------------------------------------------------------------------

def _modulate_kernel(tex_ref, light_ref, expand_ref, out_ref):
    # tex_ref/out_ref: (br, L) lane-dense texture slab (L multiple of 128);
    # light_ref: (br, g*3); expand_ref: (g*3, L) constant 0/1 matrix.
    # precision=HIGHEST: keep f32 light exact through the MXU (0/1 selection).
    slab = jnp.dot(light_ref[...], expand_ref[...],
                   precision=jax.lax.Precision.HIGHEST,
                   preferred_element_type=jnp.float32)
    out_ref[...] = (tex_ref[...] * slab).astype(out_ref.dtype)


def _mul_kernel(a_ref, b_ref, out_ref):
    out_ref[...] = (a_ref[...] * b_ref[...]).astype(out_ref.dtype)


# ----------------------------------------------------------------------------
# Wrappers
# ----------------------------------------------------------------------------

def _apply_light(textures, light):
    """textures: (B, N, T, 3); light: (B, N, 3) f32 -> textures * light[:, :, None, :]."""
    B, N, T, C = textures.shape
    assert C == 3
    lane_unit = T * 3
    g = 128 // math.gcd(lane_unit, 128)      # faces folded per row -> L % 128 == 0
    orig_N = N
    if (B * N) % g != 0:
        # TODO(synk): rare fallback -- pad a few dummy faces so the lane fold stays
        # 128-dense (one extra copy; preserves unmasked full-lane stores in the kernel).
        N = _ceil_to(N, g)
        textures = jnp.pad(textures, ((0, 0), (0, N - orig_N), (0, 0), (0, 0)))
        light = jnp.pad(light, ((0, 0), (0, N - orig_N), (0, 0)))

    R = (B * N) // g
    L = g * lane_unit                        # = lcm(T*3, 128), multiple of 128

    tex2 = textures.reshape(R, L)            # free, contiguous reshape
    itemsize = jnp.dtype(textures.dtype).itemsize
    sub = 16 if itemsize == 2 else 8         # bf16 sublane packing is 16
    br = _pick_block_rows(R, L * itemsize, sub=sub)
    grid = (pl.cdiv(R, br),)                 # ragged last block: no wrapper pad / slice

    cparams = pltpu.CompilerParams(
        dimension_semantics=("parallel",),
        vmem_limit_bytes=_VMEM_LIMIT_BYTES)

    if T == 1:
        # Expand matrix would be identity: plain lane-dense elementwise multiply.
        light2 = light.reshape(R, L)
        out2 = pl.pallas_call(
            _mul_kernel,
            out_shape=jax.ShapeDtypeStruct((R, L), textures.dtype),
            grid=grid,
            in_specs=[pl.BlockSpec((br, L), lambda i: (i, 0)),
                      pl.BlockSpec((br, L), lambda i: (i, 0))],
            out_specs=pl.BlockSpec((br, L), lambda i: (i, 0)),
            compiler_params=cparams,
        )(tex2, light2)
    else:
        light2 = light.reshape(R, g * 3)
        expand = _expand_matrix(g, T)        # (g*3, L) constant 0/1 matrix
        out2 = pl.pallas_call(
            _modulate_kernel,
            out_shape=jax.ShapeDtypeStruct((R, L), textures.dtype),
            grid=grid,
            in_specs=[pl.BlockSpec((br, L), lambda i: (i, 0)),
                      pl.BlockSpec((br, g * 3), lambda i: (i, 0)),
                      pl.BlockSpec((g * 3, L), lambda i: (0, 0))],
            out_specs=pl.BlockSpec((br, L), lambda i: (i, 0)),
            compiler_params=cparams,
        )(tex2, light2, expand)

    out = out2.reshape(B, N, T, 3)
    if N != orig_N:
        out = out[:, :orig_N]
    return out


def _lighting_surface(normals, textures, params):
    light = _compute_light(normals, params, clamp=params['clamp_lighting'])  # (B, NF, 3)
    return _apply_light(textures, light)


def _lighting_vertex(normals, textures, params):
    B, NV, C = textures.shape
    light = _compute_light(normals, params, clamp=False)                     # (B, NV, 3)
    out = _apply_light(textures.reshape(B, NV, 1, C), light)                 # T = 1 path
    return out.reshape(B, NV, C)


class Lighting:
    """JAX/Pallas port of soft_renderer.Lighting (ambient + one directional light)."""

    def __init__(self, light_mode='surface', intensity_ambient=0.5,
                 color_ambient=(1.0, 1.0, 1.0), intensity_directionals=0.5,
                 color_directionals=(1.0, 1.0, 1.0), directions=(0.0, 1.0, 0.0),
                 clamp_lighting=False):
        if light_mode not in ('surface', 'vertex'):
            raise ValueError('Lighting mode only support surface and vertex')
        self.light_mode = light_mode
        self.params = dict(
            intensity_ambient=float(intensity_ambient),
            color_ambient=tuple(float(c) for c in color_ambient),
            intensity_directional=float(intensity_directionals),
            color_directional=tuple(float(c) for c in color_directionals),
            direction=tuple(float(c) for c in directions),
            clamp_lighting=bool(clamp_lighting),
        )
        fn = _lighting_surface if light_mode == 'surface' else _lighting_vertex
        self._apply = jax.jit(functools.partial(fn, params=self.params))

    def __call__(self, normals, textures):
        return self._apply(normals, textures)


# ----------------------------------------------------------------------------
# Reference + demo
# ----------------------------------------------------------------------------

def _reference(normals, textures, params, mode):
    light = _compute_light(
        normals, params, clamp=(params['clamp_lighting'] and mode == 'surface'))
    if mode == 'surface':
        return textures * light[:, :, None, :]
    return textures * light


if __name__ == "__main__":
    key = jax.random.PRNGKey(0)
    B, NF, T = 2, 128, 16   # batch, num faces, texture samples per face (texture_res**2)
    k1, k2, k3, k4 = jax.random.split(key, 4)

    # --- surface mode ---
    surface_normals = jax.random.normal(k1, (B, NF, 3), dtype=jnp.float32)
    surface_normals = surface_normals / (
        jnp.linalg.norm(surface_normals, axis=-1, keepdims=True) + 1e-8)
    textures = jax.random.uniform(k2, (B, NF, T, 3), dtype=jnp.float32)

    lighting = Lighting(light_mode='surface',
                        intensity_ambient=0.5, color_ambient=(1.0, 1.0, 1.0),
                        intensity_directionals=0.5, color_directionals=(1.0, 1.0, 1.0),
                        directions=(0.0, 1.0, 0.0), clamp_lighting=False)
    out = jax.block_until_ready(lighting(surface_normals, textures))
    ref = _reference(surface_normals, textures, lighting.params, 'surface')
    assert out.shape == (B, NF, T, 3)
    assert jnp.allclose(out, ref, atol=1e-5, rtol=1e-5), \
        float(jnp.max(jnp.abs(out - ref)))

    # --- vertex mode ---
    NV = 64
    vertex_normals = jax.random.normal(k3, (B, NV, 3), dtype=jnp.float32)
    vertex_normals = vertex_normals / (
        jnp.linalg.norm(vertex_normals, axis=-1, keepdims=True) + 1e-8)
    vtex = jax.random.uniform(k4, (B, NV, 3), dtype=jnp.float32)

    lighting_v = Lighting(light_mode='vertex')
    out_v = jax.block_until_ready(lighting_v(vertex_normals, vtex))
    ref_v = _reference(vertex_normals, vtex, lighting_v.params, 'vertex')
    assert out_v.shape == (B, NV, 3)
    assert jnp.allclose(out_v, ref_v, atol=1e-5, rtol=1e-5)

    print("KERNEL_OK")
</pallas_src>

<mosaic_0001>
module attributes {stable_mosaic.version = 11 : i64} {
  func.func @_modulate_kernel(%arg0: i32, %arg1: memref<16x384xf32, #tpu.memory_space<vmem>>, %arg2: memref<16x24xf32, #tpu.memory_space<vmem>>, %arg3: memref<24x384xf32, #tpu.memory_space<vmem>>, %arg4: memref<16x384xf32, #tpu.memory_space<vmem>>) attributes {dimension_semantics = [#tpu.dimension_semantics<parallel>], iteration_bounds = array<i64: 2>, scalar_prefetch = 0 : i64, scratch_operands = 0 : i64, tpu.core_type = #tpu.core_type<tc>, window_params = [{transform_indices = @transform_0, window_bounds = array<i64: 16, 384>}, {transform_indices = @transform_1, window_bounds = array<i64: 16, 24>}, {pipeline_mode = #tpu.pipeline_mode<synchronous>, transform_indices = @transform_2, window_bounds = array<i64: 24, 384>}, {transform_indices = @transform_3, window_bounds = array<i64: 16, 384>}]} {
    %c0 = arith.constant 0 : index
    %c0_0 = arith.constant 0 : index
    %0 = vector.load %arg2[%c0, %c0_0] : memref<16x24xf32, #tpu.memory_space<vmem>>, vector<16x24xf32>
    %c0_1 = arith.constant 0 : index
    %c0_2 = arith.constant 0 : index
    %1 = vector.load %arg3[%c0_1, %c0_2] : memref<24x384xf32, #tpu.memory_space<vmem>>, vector<24x384xf32>
    %cst = arith.constant dense<0.000000e+00> : vector<16x384xf32>
    %2 = tpu.matmul %0, %1, %cst {dimension_numbers = #tpu.dot_dimension_numbers<[1], [0], [0], [1], [0, 0, 1, 1], [], []>, precision = #tpu.contract_precision<fp32>} : vector<16x24xf32>, vector<24x384xf32>, vector<16x384xf32> -> vector<16x384xf32>
    %c0_3 = arith.constant 0 : index
    %c0_4 = arith.constant 0 : index
    %3 = vector.load %arg1[%c0_3, %c0_4] : memref<16x384xf32, #tpu.memory_space<vmem>>, vector<16x384xf32>
    %4 = arith.mulf %3, %2 : vector<16x384xf32>
    %c0_5 = arith.constant 0 : index
    %c0_6 = arith.constant 0 : index
    %5 = vector.load %arg4[%c0_5, %c0_6] : memref<16x384xf32, #tpu.memory_space<vmem>>, vector<16x384xf32>
    tpu.vector_store %arg4[%c0_5, %c0_6], %4 {strides = array<i32>} : memref<16x384xf32, #tpu.memory_space<vmem>>, vector<16x384xf32>,
    return
  }
  func.func @transform_0(%arg0: i32) -> (i32, i32) {
    %c0_i32 = arith.constant 0 : i32
    %c0_i32_0 = arith.constant 0 : i32
    return %arg0, %c0_i32 : i32, i32
  }
  func.func @transform_1(%arg0: i32) -> (i32, i32) {
    %c0_i32 = arith.constant 0 : i32
    %c0_i32_0 = arith.constant 0 : i32
    return %arg0, %c0_i32 : i32, i32
  }
  func.func @transform_2(%arg0: i32) -> (i32, i32) {
    %c0_i32 = arith.constant 0 : i32
    %c0_i32_0 = arith.constant 0 : i32
    %c0_i32_1 = arith.constant 0 : i32
    return %c0_i32, %c0_i32_0 : i32, i32
  }
  func.func @transform_3(%arg0: i32) -> (i32, i32) {
    %c0_i32 = arith.constant 0 : i32
    %c0_i32_0 = arith.constant 0 : i32
    return %arg0, %c0_i32 : i32, i32
  }
}

</mosaic_0001>

<llo_original>
// kernel: _lighting_surface.1
$region0: #{_lighting_surface.1}
  #allocation0 [shape = 'u32[]', space=smem, size = 0x4, offset = 0x4, fixed_abs, tag = 'smem constant byte address 0x4 - core index']
  #allocation1 [shape = 'u32[144,128]{1,0:T(1,128)}', space=vmem, size = 0x12000, scoped, tag = 'internal scratch']
  %s0 = inlined_call_operand.vmem [shape: f32[32,384], index: 0, kind: input, shape index: {}]
  %s1 = inlined_call_operand.vmem [shape: f32[32,24], index: 1, kind: input, shape index: {}]
  %s2 = inlined_call_operand.vmem [shape: f32[24,384], index: 2, kind: input, shape index: {}]
  %s3 = inlined_call_operand.vmem [shape: f32[32,384], index: 3, kind: output, shape index: {}]
  %s4 = sld [smem:[#allocation0]]
  $region45: #{_lighting_surface.1} parent=0
    _
  %s6 = ssub.s32 1, %s4
  %s7 = scalar_select 0, %s6, %s4
  loop: start=0, step=1, limit=4
  $region2: #{_lighting_surface.1} parent=0 // loop_pre_header
    _
  $region3: #{_lighting_surface.1} parent=0 // loop_header
    %s9 = sphi 0, %s13
    %p10 = scmp.ge.s32.totalorder %s9, 4
    %s19 = sphi 0, %s21
    %s22 = sphi 0, %s19
    %s23 = sphi 0, %s22
    %s39 = sphi 0, %s23
    %s45 = sphi 0, %s47
    %s48 = sphi 0, %s45
    %s49 = sphi 0, %s48
    %s65 = sphi 0, %s49
    %s69 = sphi 0, %s69
    %s71 = sphi 0, %s69
    %s72 = sphi 0, %s71
    %s86 = sphi 0, %s72
    %s92 = sphi 0, %s94
    %s95 = sphi 0, %s92
    %s96 = sphi 0, %s95
    %s112 = sphi 0, %s96
  $region4: #{_lighting_surface.1} parent=0 // loop_header_branch
    %12 = sbr.rel (%p10) target = $region8
  $region5: #{_lighting_surface.1} parent=0 // loop_body
    %s14 = ssub.s32 %s9, 1
    %s15 = ssub.s32 %s9, 2
    %s16 = sadd.s32 %s9, 1
    %s17 = ssub.s32 %s9, %s16
    %p18 = scmp.eq.s32.totalorder %s17, 0
    %s20 = sadd.s32 %s19, 1
    %s21 = scalar_select %p18, %s19, %s20
    %p24 = pneg %p18
    %p25 = scmp.eq.s32.totalorder %s9, 1
    %p26 = por %p24, %p25
    %p27 = scmp.ne.s32.totalorder %s19, %s22
    %p28 = scmp.eq.s32.totalorder %s9, 0
    %p29 = por %p27, %p28
    %p30 = scmp.ne.s32.totalorder %s19, %s22
    %p31 = scmp.eq.s32.totalorder %s14, 1
    %p32 = por %p30, %p31
    %p33 = scmp.ne.s32.totalorder %s22, %s23
    %p34 = scmp.eq.s32.totalorder %s14, 0
    %p35 = por %p33, %p34
    %p36 = scmp.ne.s32.totalorder %s22, %s23
    %p37 = scmp.eq.s32.totalorder %s15, 1
    %p38 = por %p36, %p37
    %p40 = scmp.ne.s32.totalorder %s23, %s39
    %p41 = scmp.eq.s32.totalorder %s15, 0
    %p42 = por %p40, %p41
    %s43 = ssub.s32 %s9, %s16
    %p44 = scmp.eq.s32.totalorder %s43, 0
    %s46 = sadd.s32 %s45, 1
    %s47 = scalar_select %p44, %s45, %s46
    %p50 = pneg %p44
    %p51 = scmp.eq.s32.totalorder %s9, 1
    %p52 = por %p50, %p51
    %p53 = scmp.ne.s32.totalorder %s45, %s48
    %p54 = scmp.eq.s32.totalorder %s9, 0
    %p55 = por %p53, %p54
    %p56 = scmp.ne.s32.totalorder %s45, %s48
    %p57 = scmp.eq.s32.totalorder %s14, 1
    %p58 = por %p56, %p57
    %p59 = scmp.ne.s32.totalorder %s48, %s49
    %p60 = scmp.eq.s32.totalorder %s14, 0
    %p61 = por %p59, %p60
    %p62 = scmp.ne.s32.totalorder %s48, %s49
    %p63 = scmp.eq.s32.totalorder %s15, 1
    %p64 = por %p62, %p63
    %p66 = scmp.ne.s32.totalorder %s49, %s65
    %p67 = scmp.eq.s32.totalorder %s15, 0
    %p68 = por %p66, %p67
    %s70 = sadd.s32 %s69, 1
    %p73 = scmp.eq.s32.totalorder %s9, 1
    %p74 = scmp.ne.s32.totalorder %s69, %s71
    %p75 = scmp.eq.s32.totalorder %s9, 0
    %p76 = por %p74, %p75
    %p77 = scmp.ne.s32.totalorder %s69, %s71
    %p78 = scmp.eq.s32.totalorder %s14, 1
    %p79 = por %p77, %p78
    %p80 = scmp.ne.s32.totalorder %s71, %s72
    %p81 = scmp.eq.s32.totalorder %s14, 0
    %p82 = por %p80, %p81
    %p83 = scmp.ne.s32.totalorder %s71, %s72
    %p84 = scmp.eq.s32.totalorder %s15, 1
    %p85 = por %p83, %p84
    %p87 = scmp.ne.s32.totalorder %s72, %s86
    %p88 = scmp.eq.s32.totalorder %s15, 0
    %p89 = por %p87, %p88
    %s90 = ssub.s32 %s9, %s16
    %p91 = scmp.eq.s32.totalorder %s90, 0
    %s93 = sadd.s32 %s92, 1
    %s94 = scalar_select %p91, %s92, %s93
    %p97 = pneg %p91
    %p98 = scmp.eq.s32.totalorder %s9, 1
    %p99 = por %p97, %p98
    %p100 = scmp.ne.s32.totalorder %s92, %s95
    %p101 = scmp.eq.s32.totalorder %s9, 0
    %p102 = por %p100, %p101
    %p103 = scmp.ne.s32.totalorder %s92, %s95
    %p104 = scmp.eq.s32.totalorder %s14, 1
    %p105 = por %p103, %p104
    %p106 = scmp.ne.s32.totalorder %s95, %s96
    %p107 = scmp.eq.s32.totalorder %s14, 0
    %p108 = por %p106, %p107
    %p109 = scmp.ne.s32.totalorder %s95, %s96
    %p110 = scmp.eq.s32.totalorder %s15, 1
    %p111 = por %p109, %p110
    %p113 = scmp.ne.s32.totalorder %s96, %s112
    %p114 = scmp.eq.s32.totalorder %s15, 0
    %p115 = por %p113, %p114
    %p116 = scmp.le.s32.totalorder 1, %s9
    %p117 = scmp.lt.s32.totalorder %s9, 3
    %p118 = pnand %p116, %p117
    %p119 = pneg %p118
    // Predicated region
    $region9: #{_lighting_surface.1} parent=5 // pred_check
      _
    $region10: #{_lighting_surface.1} parent=5 // pred_check_branch
      %121 = sbr.rel (%p118) target = $region12
    $region11: #{_lighting_surface.1} parent=5 // pred_region
      %s122 = ssub.s32 %s9, 1
      // Predicated region
      $region13: #{_lighting_surface.1} parent=11 // pred_check
        %p123 = pneg %p82
      $region14: #{_lighting_surface.1} parent=11 // pred_check_branch
        %125 = sbr.rel (%p123) target = $region16
      $region15: #{_lighting_surface.1} parent=11 // pred_region
        _
      $region16: #{_lighting_surface.1} parent=11 // pred_fallthru
        _
    $region12: #{_lighting_surface.1} parent=5 // pred_fallthru
      _
    %p126 = scmp.lt.s32.totalorder %s9, 2
    // Predicated region
    $region17: #{_lighting_surface.1} parent=5 // pred_check
      %p127 = pneg %p126
    $region18: #{_lighting_surface.1} parent=5 // pred_check_branch
      %129 = sbr.rel (%p127) target = $region20
    $region19: #{_lighting_surface.1} parent=5 // pred_region
      // Predicated region
      $region21: #{_lighting_surface.1} parent=19 // pred_check
        %p130 = pneg %p29
      $region22: #{_lighting_surface.1} parent=19 // pred_check_branch
        %132 = sbr.rel (%p130) target = $region24
      $region23: #{_lighting_surface.1} parent=19 // pred_region
        %s133 = smul.u32 2, %s9
        %p134 = scmp.lt.s32.totalorder %s133, 3
        %s135 = scalar_select %p134, %s133, 3
        %s136 = smul.addr %s135, 3
        %s137 = smul.addr %s136, 8
        %s138 = scalar_lea.vmem %s0, %s137
        %s139 = smul.u32 2, %s9
      $region24: #{_lighting_surface.1} parent=19 // pred_fallthru
        _
      // Predicated region
      $region25: #{_lighting_surface.1} parent=19 // pred_check
        %p140 = pneg %p55
      $region26: #{_lighting_surface.1} parent=19 // pred_check_branch
        %142 = sbr.rel (%p140) target = $region28
      $region27: #{_lighting_surface.1} parent=19 // pred_region
        %s143 = smul.u32 2, %s9
        %p144 = scmp.lt.s32.totalorder %s143, 3
        %s145 = scalar_select %p144, %s143, 3
        %s146 = smul.addr %s145, 8
        %s147 = scalar_lea.vmem %s1, %s146
        %s148 = smul.u32 2, %s9
      $region28: #{_lighting_surface.1} parent=19 // pred_fallthru
        _
    $region20: #{_lighting_surface.1} parent=5 // pred_fallthru
      _
    %p149 = scmp.le.s32.totalorder 1, %s9
    %p150 = scmp.lt.s32.totalorder %s9, 3
    %p151 = pnand %p149, %p150
    %p152 = pneg %p151
    // Predicated region
    $region29: #{_lighting_surface.1} parent=5 // pred_check
      _
    $region30: #{_lighting_surface.1} parent=5 // pred_check_branch
      %154 = sbr.rel (%p151) target = $region32
    $region31: #{_lighting_surface.1} parent=5 // pred_region
      %s155 = ssub.s32 %s9, 1
      %s156 = smul.u32 2, %s14
      %p157 = scmp.lt.s32.totalorder %s156, 3
      %s158 = scalar_select %p157, %s156, 3
      %s159 = smul.addr %s158, 3
      %s160 = smul.addr %s159, 8
      %s161 = scalar_lea.vmem %s0, %s160
      %p162 = pneg %p35
      %p163 = pneg %p32
      %s164 = smul.u32 2, %s14
      %p165 = scmp.lt.s32.totalorder %s164, 3
      %s166 = scalar_select %p165, %s164, 3
      %s167 = smul.addr %s166, 8
      %s168 = scalar_lea.vmem %s1, %s167
      %p169 = pneg %p61
      %p170 = pneg %p58
      %p171 = pneg %p82
      %p172 = pneg %p79
      %p173 = pneg %p108
      %p174 = pneg %p105
      %s175 = smul.u32 2, %s14
      %p176 = scmp.lt.s32.totalorder %s175, 3
      %s177 = scalar_select %p176, %s175, 3
      %s178 = smul.addr %s177, 3
      %s179 = smul.addr %s178, 8
      %s180 = scalar_lea.vmem %s3, %s179
      %s181 = smul.u32 2, %s14
      %p182 = scmp.lt.s32.totalorder %s181, 3
      %s183 = scalar_select %p182, %s181, 3
      %s184 = smul.addr %s183, 3
      %s185 = smul.addr %s184, 8
      %s186 = scalar_lea.vmem %s0, %s185
      %s187 = smul.u32 2, %s14
      %s188 = smul.u32 2, %s14
      %p189 = scmp.lt.s32.totalorder %s188, 3
      %s190 = scalar_select %p189, %s188, 3
      %s191 = smul.addr %s190, 8
      %s192 = scalar_lea.vmem %s1, %s191
      %s193 = smul.u32 2, %s14
      %s194 = smul.u32 2, %s14
      %p195 = scmp.lt.s32.totalorder %s194, 3
      %s196 = scalar_select %p195, %s194, 3
      %s197 = smul.addr %s196, 3
      %s198 = smul.addr %s197, 8
      %s199 = scalar_lea.vmem %s3, %s198
      %s200 = smul.u32 2, %s14
      %v201 = vld [vmem:[%s192] sm:$0xff]
      %v202 = vld [vmem:[%s192 + $0x8] sm:$0xff]
      %v203 = vld [vmem:[%s2] sm:$0xff]
      %v204 = vld [vmem:[%s2 + $0x8] sm:$0xff]
      %v205 = vld [vmem:[%s2 + $0x10] sm:$0xff]
      %v206 = vld [vmem:[%s2 + $0x18] sm:$0xff]
      %v207 = vld [vmem:[%s2 + $0x20] sm:$0xff]
      %v208 = vld [vmem:[%s2 + $0x28] sm:$0xff]
      %v209 = vld [vmem:[%s2 + $0x30] sm:$0xff]
      %v210 = vld [vmem:[%s2 + $0x38] sm:$0xff]
      %v211 = vld [vmem:[%s2 + $0x40] sm:$0xff]
      %vm212 = vcmask 195584
      %v214 = vsel %vm212, %v201, 0
      %v217 = vsel %vm212, %v202, 0
      %219 = vmatprep.subr.mxu0 0.0
      %220 = vmatpush1.msra.mxu0 0.0
      %221 = vmatprep.subr.mxu0 0.0
      %222 = vmatpush1.msra.mxu0 0.0
      %223 = vmatprep.subr.mxu0 0.0
      %224 = vmatpush1.msra.mxu0 0.0
      %225 = vmatprep.subr.mxu0 0.0
      %226 = vmatpush1.msra.mxu0 0.0
      %227 = vmatprep.subr.mxu0 0.0
      %228 = vmatpush1.msra.mxu0 0.0
      %229 = vmatprep.subr.mxu0 0.0
      %230 = vmatpush1.msra.mxu0 0.0
      %231 = vmatprep.subr.mxu0 0.0
      %232 = vmatpush1.msra.mxu0 0.0
      %233 = vmatprep.subr.mxu0 0.0
      %234 = vmatpush1.msra.mxu0 0.0
      %235 = vmatprep.subr.mxu0 0.0
      %236 = vmatpush1.msra.mxu0 0.0
      %237 = vmatprep.subr.mxu0 0.0
      %238 = vmatpush1.msra.mxu0 0.0
      %239 = vmatprep.subr.mxu0 0.0
      %240 = vmatpush1.msra.mxu0 0.0
      %241 = vmatprep.subr.mxu0 0.0
      %242 = vmatpush1.msra.mxu0 0.0
      %243 = vmatprep.subr.mxu0 0.0
      %244 = vmatpush1.msra.mxu0 0.0
      %v245 = vand.u32 %v210, 4294901760
      %246 = vmatprep.subr.mxu0 %v245
      %v247 = vand.u32 %v209, 4294901760
      %248 = vmatpush1.msra.mxu0 %v247
      %v249 = vand.u32 %v207, 4294901760
      %250 = vmatprep.subr.mxu0 %v249
      %v251 = vand.u32 %v206, 4294901760
      %252 = vmatpush1.msra.mxu0 %v251
      %v253 = vand.u32 %v204, 4294901760
      %254 = vmatprep.subr.mxu0 %v253
      %v255 = vand.u32 %v203, 4294901760
      %256 = vmatpush1.msra.mxu0 %v255
      %257 = vmatprep.subr.mxu0 0.0
      %258 = vmatpush2.msra.mxu0 0.0
      %259 = vmatprep.subr.mxu0 0.0
      %260 = vmatpush2.msra.mxu0 0.0
      %261 = vmatprep.subr.mxu0 0.0
      %262 = vmatpush2.msra.mxu0 0.0
      %263 = vmatprep.subr.mxu0 0.0
      %264 = vmatpush2.msra.mxu0 0.0
      %265 = vmatprep.subr.mxu0 0.0
      %266 = vmatpush2.msra.mxu0 0.0
      %267 = vmatprep.subr.mxu0 0.0
      %268 = vmatpush2.msra.mxu0 0.0
      %269 = vmatprep.subr.mxu0 0.0
      %270 = vmatpush2.msra.mxu0 0.0
      %271 = vmatprep.subr.mxu0 0.0
      %272 = vmatpush2.msra.mxu0 0.0
      %273 = vmatprep.subr.mxu0 0.0
      %274 = vmatpush2.msra.mxu0 0.0
      %275 = vmatprep.subr.mxu0 0.0
      %276 = vmatpush2.msra.mxu0 0.0
      %277 = vmatprep.subr.mxu0 0.0
      %278 = vmatpush2.msra.mxu0 0.0
      %279 = vmatprep.subr.mxu0 0.0
      %280 = vmatpush2.msra.mxu0 0.0
      %281 = vmatprep.subr.mxu0 0.0
      %282 = vmatpush2.msra.mxu0 0.0
      %283 = vmatprep.subr.mxu0 0.0
      %284 = vmatpush2.msra.mxu0 0.0
      %285 = vmatprep.subr.mxu0 0.0
      %286 = vmatpush2.msra.mxu0 0.0
      %287 = vmatprep.subr.mxu0 0.0
      %288 = vmatpush2.msra.mxu0 0.0
      %289 = vmatprep.mubr.f32.mxu0 0.0
      %v290 = vand.u32 %v214, 4294901760
      %v291 = vsub.f32 %v214, %v290
      %v292 = vand.u32 %v291, 4294901760
      %v293 = vsub.f32 %v291, %v292
      %v294 = vand.u32 %v293, 4294901760
      %295 = vmatmul.mubr.f32.gmra.mxu0 %v294
      %v296 = vpop.f32.mrf.mxu0
      %v297 = vadd.f32 0.0, %v296
      %v298 = vpop.f32.mrf.mxu0
      %v299 = vadd.f32 0.0, %v298
      %300 = vmatprep.mubr.f32.mxu0 0.0
      %v301 = vand.u32 %v217, 4294901760
      %v302 = vsub.f32 %v217, %v301
      %v303 = vand.u32 %v302, 4294901760
      %v304 = vsub.f32 %v302, %v303
      %v305 = vand.u32 %v304, 4294901760
      %306 = vmatmul.mubr.f32.gmra.mxu0 %v305
      %v307 = vpop.f32.mrf.mxu0
      %v308 = vadd.f32 0.0, %v307
      %v309 = vpop.f32.mrf.mxu0
      %v310 = vadd.f32 0.0, %v309
      %311 = vdwg.mxu0
      %312 = vmatprep.subr.mxu0 0.0
      %313 = vmatpush1.msra.mxu0 0.0
      %314 = vmatprep.subr.mxu0 0.0
      %315 = vmatpush1.msra.mxu0 0.0
      %316 = vmatprep.subr.mxu0 0.0
      %317 = vmatpush1.msra.mxu0 0.0
      %318 = vmatprep.subr.mxu0 0.0
      %319 = vmatpush1.msra.mxu0 0.0
      %320 = vmatprep.subr.mxu0 0.0
      %321 = vmatpush1.msra.mxu0 0.0
      %322 = vmatprep.subr.mxu0 0.0
      %323 = vmatpush1.msra.mxu0 0.0
      %324 = vmatprep.subr.mxu0 0.0
      %325 = vmatpush1.msra.mxu0 0.0
      %326 = vmatprep.subr.mxu0 0.0
      %327 = vmatpush1.msra.mxu0 0.0
      %328 = vmatprep.subr.mxu0 0.0
      %329 = vmatpush1.msra.mxu0 0.0
      %330 = vmatprep.subr.mxu0 0.0
      %331 = vmatpush1.msra.mxu0 0.0
      %332 = vmatprep.subr.mxu0 0.0
      %333 = vmatpush1.msra.mxu0 0.0
      %334 = vmatprep.subr.mxu0 0.0
      %335 = vmatpush1.msra.mxu0 0.0
      %336 = vmatprep.subr.mxu0 0.0
      %337 = vmatpush1.msra.mxu0 0.0
      %v338 = vand.u32 %v210, 4294901760
      %v339 = vsub.f32 %v210, %v338
      %v340 = vand.u32 %v339, 4294901760
      %v341 = vsub.f32 %v339, %v340
      %v342 = vand.u32 %v341, 4294901760
      %343 = vmatprep.subr.mxu0 %v342
      %v344 = vand.u32 %v209, 4294901760
      %v345 = vsub.f32 %v209, %v344
      %v346 = vand.u32 %v345, 4294901760
      %v347 = vsub.f32 %v345, %v346
      %v348 = vand.u32 %v347, 4294901760
      %349 = vmatpush1.msra.mxu0 %v348
      %v350 = vand.u32 %v207, 4294901760
      %v351 = vsub.f32 %v207, %v350
      %v352 = vand.u32 %v351, 4294901760
      %v353 = vsub.f32 %v351, %v352
      %v354 = vand.u32 %v353, 4294901760
      %355 = vmatprep.subr.mxu0 %v354
      %v356 = vand.u32 %v206, 4294901760
      %v357 = vsub.f32 %v206, %v356
      %v358 = vand.u32 %v357, 4294901760
      %v359 = vsub.f32 %v357, %v358
      %v360 = vand.u32 %v359, 4294901760
      %361 = vmatpush1.msra.mxu0 %v360
      %v362 = vand.u32 %v204, 4294901760
      %v363 = vsub.f32 %v204, %v362
      %v364 = vand.u32 %v363, 4294901760
      %v365 = vsub.f32 %v363, %v364
      %v366 = vand.u32 %v365, 4294901760
      %367 = vmatprep.subr.mxu0 %v366
      %v368 = vand.u32 %v203, 4294901760
      %v369 = vsub.f32 %v203, %v368
      %v370 = vand.u32 %v369, 4294901760
      %v371 = vsub.f32 %v369, %v370
      %v372 = vand.u32 %v371, 4294901760
      %373 = vmatpush1.msra.mxu0 %v372
      %374 = vmatprep.subr.mxu0 0.0
      %375 = vmatpush2.msra.mxu0 0.0
      %376 = vmatprep.subr.mxu0 0.0
      %377 = vmatpush2.msra.mxu0 0.0
      %378 = vmatprep.subr.mxu0 0.0
      %379 = vmatpush2.msra.mxu0 0.0
      %380 = vmatprep.subr.mxu0 0.0
      %381 = vmatpush2.msra.mxu0 0.0
      %382 = vmatprep.subr.mxu0 0.0
      %383 = vmatpush2.msra.mxu0 0.0
      %384 = vmatprep.subr.mxu0 0.0
      %385 = vmatpush2.msra.mxu0 0.0
      %386 = vmatprep.subr.mxu0 0.0
      %387 = vmatpush2.msra.mxu0 0.0
      %388 = vmatprep.subr.mxu0 0.0
      %389 = vmatpush2.msra.mxu0 0.0
      %390 = vmatprep.subr.mxu0 0.0
      %391 = vmatpush2.msra.mxu0 0.0
      %392 = vmatprep.subr.mxu0 0.0
      %393 = vmatpush2.msra.mxu0 0.0
      %394 = vmatprep.subr.mxu0 0.0
      %395 = vmatpush2.msra.mxu0 0.0
      %396 = vmatprep.subr.mxu0 0.0
      %397 = vmatpush2.msra.mxu0 0.0
      %398 = vmatprep.subr.mxu0 0.0
      %399 = vmatpush2.msra.mxu0 0.0
      %400 = vmatprep.subr.mxu0 0.0
      %401 = vmatpush2.msra.mxu0 0.0
      %402 = vmatprep.subr.mxu0 0.0
      %403 = vmatpush2.msra.mxu0 0.0
      %404 = vmatprep.subr.mxu0 0.0
      %405 = vmatpush2.msra.mxu0 0.0
      %406 = vmatprep.mubr.f32.mxu0 0.0
      %v407 = vand.u32 %v214, 4294901760
      %408 = vmatmul.mubr.f32.gmra.mxu0 %v407
      %v409 = vpop.f32.mrf.mxu0
      %v410 = vadd.f32 %v297, %v409
      %v411 = vpop.f32.mrf.mxu0
      %v412 = vadd.f32 %v299, %v411
      %413 = vmatprep.mubr.f32.mxu0 0.0
      %v414 = vand.u32 %v217, 4294901760
      %415 = vmatmul.mubr.f32.gmra.mxu0 %v414
      %v416 = vpop.f32.mrf.mxu0
      %v417 = vadd.f32 %v308, %v416
      %v418 = vpop.f32.mrf.mxu0
      %v419 = vadd.f32 %v310, %v418
      %420 = vdwg.mxu0
      %421 = vmatprep.subr.mxu0 0.0
      %422 = vmatpush1.msra.mxu0 0.0
      %423 = vmatprep.subr.mxu0 0.0
      %424 = vmatpush1.msra.mxu0 0.0
      %425 = vmatprep.subr.mxu0 0.0
      %426 = vmatpush1.msra.mxu0 0.0
      %427 = vmatprep.subr.mxu0 0.0
      %428 = vmatpush1.msra.mxu0 0.0
      %429 = vmatprep.subr.mxu0 0.0
      %430 = vmatpush1.msra.mxu0 0.0
      %431 = vmatprep.subr.mxu0 0.0
      %432 = vmatpush1.msra.mxu0 0.0
      %433 = vmatprep.subr.mxu0 0.0
      %434 = vmatpush1.msra.mxu0 0.0
      %435 = vmatprep.subr.mxu0 0.0
      %436 = vmatpush1.msra.mxu0 0.0
      %437 = vmatprep.subr.mxu0 0.0
      %438 = vmatpush1.msra.mxu0 0.0
      %439 = vmatprep.subr.mxu0 0.0
      %440 = vmatpush1.msra.mxu0 0.0
      %441 = vmatprep.subr.mxu0 0.0
      %442 = vmatpush1.msra.mxu0 0.0
      %443 = vmatprep.subr.mxu0 0.0
      %444 = vmatpush1.msra.mxu0 0.0
      %445 = vmatprep.subr.mxu0 0.0
      %446 = vmatpush1.msra.mxu0 0.0
      %v447 = vand.u32 %v210, 4294901760
      %v448 = vsub.f32 %v210, %v447
      %449 = vmatprep.subr.mxu0 %v448
      %v450 = vand.u32 %v209, 4294901760
      %v451 = vsub.f32 %v209, %v450
      %452 = vmatpush1.msra.mxu0 %v451
      %v453 = vand.u32 %v207, 4294901760
      %v454 = vsub.f32 %v207, %v453
      %455 = vmatprep.subr.mxu0 %v454
      %v456 = vand.u32 %v206, 4294901760
      %v457 = vsub.f32 %v206, %v456
      %458 = vmatpush1.msra.mxu0 %v457
      %v459 = vand.u32 %v204, 4294901760
      %v460 = vsub.f32 %v204, %v459
      %461 = vmatprep.subr.mxu0 %v460
      %v462 = vand.u32 %v203, 4294901760
      %v463 = vsub.f32 %v203, %v462
      %464 = vmatpush1.msra.mxu0 %v463
      %465 = vmatprep.subr.mxu0 0.0
      %466 = vmatpush2.msra.mxu0 0.0
      %467 = vmatprep.subr.mxu0 0.0
      %468 = vmatpush2.msra.mxu0 0.0
      %469 = vmatprep.subr.mxu0 0.0
      %470 = vmatpush2.msra.mxu0 0.0
      %471 = vmatprep.subr.mxu0 0.0
      %472 = vmatpush2.msra.mxu0 0.0
      %473 = vmatprep.subr.mxu0 0.0
      %474 = vmatpush2.msra.mxu0 0.0
      %475 = vmatprep.subr.mxu0 0.0
      %476 = vmatpush2.msra.mxu0 0.0
      %477 = vmatprep.subr.mxu0 0.0
      %478 = vmatpush2.msra.mxu0 0.0
      %479 = vmatprep.subr.mxu0 0.0
      %480 = vmatpush2.msra.mxu0 0.0
      %481 = vmatprep.subr.mxu0 0.0
      %482 = vmatpush2.msra.mxu0 0.0
      %483 = vmatprep.subr.mxu0 0.0
      %484 = vmatpush2.msra.mxu0 0.0
      %485 = vmatprep.subr.mxu0 0.0
      %486 = vmatpush2.msra.mxu0 0.0
      %487 = vmatprep.subr.mxu0 0.0
      %488 = vmatpush2.msra.mxu0 0.0
      %489 = vmatprep.subr.mxu0 0.0
      %490 = vmatpush2.msra.mxu0 0.0
      %491 = vmatprep.subr.mxu0 0.0
      %492 = vmatpush2.msra.mxu0 0.0
      %493 = vmatprep.subr.mxu0 0.0
      %494 = vmatpush2.msra.mxu0 0.0
      %495 = vmatprep.subr.mxu0 0.0
      %496 = vmatpush2.msra.mxu0 0.0
      %497 = vmatprep.mubr.f32.mxu0 0.0
      %v498 = vand.u32 %v214, 4294901760
      %v499 = vsub.f32 %v214, %v498
      %500 = vmatmul.mubr.f32.gmra.mxu0 %v499
      %v501 = vpop.f32.mrf.mxu0
      %v502 = vadd.f32 %v410, %v501
      %v503 = vpop.f32.mrf.mxu0
      %v504 = vadd.f32 %v412, %v503
      %505 = vmatprep.mubr.f32.mxu0 0.0
      %v506 = vand.u32 %v217, 4294901760
      %v507 = vsub.f32 %v217, %v506
      %508 = vmatmul.mubr.f32.gmra.mxu0 %v507
      %v509 = vpop.f32.mrf.mxu0
      %v510 = vadd.f32 %v417, %v509
      %v511 = vpop.f32.mrf.mxu0
      %v512 = vadd.f32 %v419, %v511
      %513 = vdwg.mxu0
      %514 = vmatprep.subr.mxu0 0.0
      %515 = vmatpush1.msra.mxu0 0.0
      %516 = vmatprep.subr.mxu0 0.0
      %517 = vmatpush1.msra.mxu0 0.0
      %518 = vmatprep.subr.mxu0 0.0
      %519 = vmatpush1.msra.mxu0 0.0
      %520 = vmatprep.subr.mxu0 0.0
      %521 = vmatpush1.msra.mxu0 0.0
      %522 = vmatprep.subr.mxu0 0.0
      %523 = vmatpush1.msra.mxu0 0.0
      %524 = vmatprep.subr.mxu0 0.0
      %525 = vmatpush1.msra.mxu0 0.0
      %526 = vmatprep.subr.mxu0 0.0
      %527 = vmatpush1.msra.mxu0 0.0
      %528 = vmatprep.subr.mxu0 0.0
      %529 = vmatpush1.msra.mxu0 0.0
      %530 = vmatprep.subr.mxu0 0.0
      %531 = vmatpush1.msra.mxu0 0.0
      %532 = vmatprep.subr.mxu0 0.0
      %533 = vmatpush1.msra.mxu0 0.0
      %534 = vmatprep.subr.mxu0 0.0
      %535 = vmatpush1.msra.mxu0 0.0
      %536 = vmatprep.subr.mxu0 0.0
      %537 = vmatpush1.msra.mxu0 0.0
      %538 = vmatprep.subr.mxu0 0.0
      %539 = vmatpush1.msra.mxu0 0.0
      %v540 = vand.u32 %v210, 4294901760
      %541 = vmatprep.subr.mxu0 %v540
      %v542 = vand.u32 %v209, 4294901760
      %543 = vmatpush1.msra.mxu0 %v542
      %v544 = vand.u32 %v207, 4294901760
      %545 = vmatprep.subr.mxu0 %v544
      %v546 = vand.u32 %v206, 4294901760
      %547 = vmatpush1.msra.mxu0 %v546
      %v548 = vand.u32 %v204, 4294901760
      %549 = vmatprep.subr.mxu0 %v548
      %v550 = vand.u32 %v203, 4294901760
      %551 = vmatpush1.msra.mxu0 %v550
      %552 = vmatprep.subr.mxu0 0.0
      %553 = vmatpush2.msra.mxu0 0.0
      %554 = vmatprep.subr.mxu0 0.0
      %555 = vmatpush2.msra.mxu0 0.0
      %556 = vmatprep.subr.mxu0 0.0
      %557 = vmatpush2.msra.mxu0 0.0
      %558 = vmatprep.subr.mxu0 0.0
      %559 = vmatpush2.msra.mxu0 0.0
      %560 = vmatprep.subr.mxu0 0.0
      %561 = vmatpush2.msra.mxu0 0.0
      %562 = vmatprep.subr.mxu0 0.0
      %563 = vmatpush2.msra.mxu0 0.0
      %564 = vmatprep.subr.mxu0 0.0
      %565 = vmatpush2.msra.mxu0 0.0
      %566 = vmatprep.subr.mxu0 0.0
      %567 = vmatpush2.msra.mxu0 0.0
      %568 = vmatprep.subr.mxu0 0.0
      %569 = vmatpush2.msra.mxu0 0.0
      %570 = vmatprep.subr.mxu0 0.0
      %571 = vmatpush2.msra.mxu0 0.0
      %572 = vmatprep.subr.mxu0 0.0
      %573 = vmatpush2.msra.mxu0 0.0
      %574 = vmatprep.subr.mxu0 0.0
      %575 = vmatpush2.msra.mxu0 0.0
      %576 = vmatprep.subr.mxu0 0.0
      %577 = vmatpush2.msra.mxu0 0.0
      %578 = vmatprep.subr.mxu0 0.0
      %579 = vmatpush2.msra.mxu0 0.0
      %580 = vmatprep.subr.mxu0 0.0
      %581 = vmatpush2.msra.mxu0 0.0
      %582 = vmatprep.subr.mxu0 0.0
      %583 = vmatpush2.msra.mxu0 0.0
      %584 = vmatprep.mubr.f32.mxu0 0.0
      %v585 = vand.u32 %v214, 4294901760
      %v586 = vsub.f32 %v214, %v585
      %v587 = vand.u32 %v586, 4294901760
      %588 = vmatmul.mubr.f32.gmra.mxu0 %v587
      %v589 = vpop.f32.mrf.mxu0
      %v590 = vadd.f32 %v502, %v589
      %v591 = vpop.f32.mrf.mxu0
      %v592 = vadd.f32 %v504, %v591
      %593 = vmatprep.mubr.f32.mxu0 0.0
      %v594 = vand.u32 %v217, 4294901760
      %v595 = vsub.f32 %v217, %v594
      %v596 = vand.u32 %v595, 4294901760
      %597 = vmatmul.mubr.f32.gmra.mxu0 %v596
      %v598 = vpop.f32.mrf.mxu0
      %v599 = vadd.f32 %v510, %v598
      %v600 = vpop.f32.mrf.mxu0
      %v601 = vadd.f32 %v512, %v600
      %602 = vdwg.mxu0
      %603 = vmatprep.subr.mxu0 0.0
      %604 = vmatpush1.msra.mxu0 0.0
      %605 = vmatprep.subr.mxu0 0.0
      %606 = vmatpush1.msra.mxu0 0.0
      %607 = vmatprep.subr.mxu0 0.0
      %608 = vmatpush1.msra.mxu0 0.0
      %609 = vmatprep.subr.mxu0 0.0
      %610 = vmatpush1.msra.mxu0 0.0
      %611 = vmatprep.subr.mxu0 0.0
      %612 = vmatpush1.msra.mxu0 0.0
      %613 = vmatprep.subr.mxu0 0.0
      %614 = vmatpush1.msra.mxu0 0.0
      %615 = vmatprep.subr.mxu0 0.0
      %616 = vmatpush1.msra.mxu0 0.0
      %617 = vmatprep.subr.mxu0 0.0
      %618 = vmatpush1.msra.mxu0 0.0
      %619 = vmatprep.subr.mxu0 0.0
      %620 = vmatpush1.msra.mxu0 0.0
      %621 = vmatprep.subr.mxu0 0.0
      %622 = vmatpush1.msra.mxu0 0.0
      %623 = vmatprep.subr.mxu0 0.0
      %624 = vmatpush1.msra.mxu0 0.0
      %625 = vmatprep.subr.mxu0 0.0
      %626 = vmatpush1.msra.mxu0 0.0
      %627 = vmatprep.subr.mxu0 0.0
      %628 = vmatpush1.msra.mxu0 0.0
      %v629 = vand.u32 %v210, 4294901760
      %v630 = vsub.f32 %v210, %v629
      %v631 = vand.u32 %v630, 4294901760
      %632 = vmatprep.subr.mxu0 %v631
      %v633 = vand.u32 %v209, 4294901760
      %v634 = vsub.f32 %v209, %v633
      %v635 = vand.u32 %v634, 4294901760
      %636 = vmatpush1.msra.mxu0 %v635
      %v637 = vand.u32 %v207, 4294901760
      %v638 = vsub.f32 %v207, %v637
      %v639 = vand.u32 %v638, 4294901760
      %640 = vmatprep.subr.mxu0 %v639
      %v641 = vand.u32 %v206, 4294901760
      %v642 = vsub.f32 %v206, %v641
      %v643 = vand.u32 %v642, 4294901760
      %644 = vmatpush1.msra.mxu0 %v643
      %v645 = vand.u32 %v204, 4294901760
      %v646 = vsub.f32 %v204, %v645
      %v647 = vand.u32 %v646, 4294901760
      %648 = vmatprep.subr.mxu0 %v647
      %v649 = vand.u32 %v203, 4294901760
      %v650 = vsub.f32 %v203, %v649
      %v651 = vand.u32 %v650, 4294901760
      %652 = vmatpush1.msra.mxu0 %v651
      %653 = vmatprep.subr.mxu0 0.0
      %654 = vmatpush2.msra.mxu0 0.0
      %655 = vmatprep.subr.mxu0 0.0
      %656 = vmatpush2.msra.mxu0 0.0
      %657 = vmatprep.subr.mxu0 0.0
      %658 = vmatpush2.msra.mxu0 0.0
      %659 = vmatprep.subr.mxu0 0.0
      %660 = vmatpush2.msra.mxu0 0.0
      %661 = vmatprep.subr.mxu0 0.0
      %662 = vmatpush2.msra.mxu0 0.0
      %663 = vmatprep.subr.mxu0 0.0
      %664 = vmatpush2.msra.mxu0 0.0
      %665 = vmatprep.subr.mxu0 0.0
      %666 = vmatpush2.msra.mxu0 0.0
      %667 = vmatprep.subr.mxu0 0.0
      %668 = vmatpush2.msra.mxu0 0.0
      %669 = vmatprep.subr.mxu0 0.0
      %670 = vmatpush2.msra.mxu0 0.0
      %671 = vmatprep.subr.mxu0 0.0
      %672 = vmatpush2.msra.mxu0 0.0
      %673 = vmatprep.subr.mxu0 0.0
      %674 = vmatpush2.msra.mxu0 0.0
      %675 = vmatprep.subr.mxu0 0.0
      %676 = vmatpush2.msra.mxu0 0.0
      %677 = vmatprep.subr.mxu0 0.0
      %678 = vmatpush2.msra.mxu0 0.0
      %679 = vmatprep.subr.mxu0 0.0
      %680 = vmatpush2.msra.mxu0 0.0
      %681 = vmatprep.subr.mxu0 0.0
      %682 = vmatpush2.msra.mxu0 0.0
      %683 = vmatprep.subr.mxu0 0.0
      %684 = vmatpush2.msra.mxu0 0.0
      %685 = vmatprep.mubr.f32.mxu0 0.0
      %v686 = vand.u32 %v214, 4294901760
      %687 = vmatmul.mubr.f32.gmra.mxu0 %v686
      %v688 = vpop.f32.mrf.mxu0
      %v689 = vadd.f32 %v590, %v688
      %v690 = vpop.f32.mrf.mxu0
      %v691 = vadd.f32 %v592, %v690
      %692 = vmatprep.mubr.f32.mxu0 0.0
      %v693 = vand.u32 %v217, 4294901760
      %694 = vmatmul.mubr.f32.gmra.mxu0 %v693
      %v695 = vpop.f32.mrf.mxu0
      %v696 = vadd.f32 %v599, %v695
      %v697 = vpop.f32.mrf.mxu0
      %v698 = vadd.f32 %v601, %v697
      %699 = vdwg.mxu0
      %700 = vmatprep.subr.mxu0 0.0
      %701 = vmatpush1.msra.mxu0 0.0
      %702 = vmatprep.subr.mxu0 0.0
      %703 = vmatpush1.msra.mxu0 0.0
      %704 = vmatprep.subr.mxu0 0.0
      %705 = vmatpush1.msra.mxu0 0.0
      %706 = vmatprep.subr.mxu0 0.0
      %707 = vmatpush1.msra.mxu0 0.0
      %708 = vmatprep.subr.mxu0 0.0
      %709 = vmatpush1.msra.mxu0 0.0
      %710 = vmatprep.subr.mxu0 0.0
      %711 = vmatpush1.msra.mxu0 0.0
      %712 = vmatprep.subr.mxu0 0.0
      %713 = vmatpush1.msra.mxu0 0.0
      %714 = vmatprep.subr.mxu0 0.0
      %715 = vmatpush1.msra.mxu0 0.0
      %716 = vmatprep.subr.mxu0 0.0
      %717 = vmatpush1.msra.mxu0 0.0
      %718 = vmatprep.subr.mxu0 0.0
      %719 = vmatpush1.msra.mxu0 0.0
      %720 = vmatprep.subr.mxu0 0.0
      %721 = vmatpush1.msra.mxu0 0.0
      %722 = vmatprep.subr.mxu0 0.0
      %723 = vmatpush1.msra.mxu0 0.0
      %724 = vmatprep.subr.mxu0 0.0
      %725 = vmatpush1.msra.mxu0 0.0
      %v726 = vand.u32 %v210, 4294901760
      %727 = vmatprep.subr.mxu0 %v726
      %v728 = vand.u32 %v209, 4294901760
      %729 = vmatpush1.msra.mxu0 %v728
      %v730 = vand.u32 %v207, 4294901760
      %731 = vmatprep.subr.mxu0 %v730
      %v732 = vand.u32 %v206, 4294901760
      %733 = vmatpush1.msra.mxu0 %v732
      %v734 = vand.u32 %v204, 4294901760
      %735 = vmatprep.subr.mxu0 %v734
      %v736 = vand.u32 %v203, 4294901760
      %737 = vmatpush1.msra.mxu0 %v736
      %738 = vmatprep.subr.mxu0 0.0
      %739 = vmatpush2.msra.mxu0 0.0
      %740 = vmatprep.subr.mxu0 0.0
      %741 = vmatpush2.msra.mxu0 0.0
      %742 = vmatprep.subr.mxu0 0.0
      %743 = vmatpush2.msra.mxu0 0.0
      %744 = vmatprep.subr.mxu0 0.0
      %745 = vmatpush2.msra.mxu0 0.0
      %746 = vmatprep.subr.mxu0 0.0
      %747 = vmatpush2.msra.mxu0 0.0
      %748 = vmatprep.subr.mxu0 0.0
      %749 = vmatpush2.msra.mxu0 0.0
      %750 = vmatprep.subr.mxu0 0.0
      %751 = vmatpush2.msra.mxu0 0.0
      %752 = vmatprep.subr.mxu0 0.0
      %753 = vmatpush2.msra.mxu0 0.0
      %754 = vmatprep.subr.mxu0 0.0
      %755 = vmatpush2.msra.mxu0 0.0
      %756 = vmatprep.subr.mxu0 0.0
      %757 = vmatpush2.msra.mxu0 0.0
      %758 = vmatprep.subr.mxu0 0.0
      %759 = vmatpush2.msra.mxu0 0.0
      %760 = vmatprep.subr.mxu0 0.0
      %761 = vmatpush2.msra.mxu0 0.0
      %762 = vmatprep.subr.mxu0 0.0
      %763 = vmatpush2.msra.mxu0 0.0
      %764 = vmatprep.subr.mxu0 0.0
      %765 = vmatpush2.msra.mxu0 0.0
      %766 = vmatprep.subr.mxu0 0.0
      %767 = vmatpush2.msra.mxu0 0.0
      %768 = vmatprep.subr.mxu0 0.0
      %769 = vmatpush2.msra.mxu0 0.0
      %770 = vmatprep.mubr.f32.mxu0 0.0
      %v771 = vand.u32 %v214, 4294901760
      %772 = vmatmul.mubr.f32.gmra.mxu0 %v771
      %v773 = vpop.f32.mrf.mxu0
      %v774 = vadd.f32 %v689, %v773
      %v775 = vpop.f32.mrf.mxu0
      %v776 = vadd.f32 %v691, %v775
      %777 = vmatprep.mubr.f32.mxu0 0.0
      %v778 = vand.u32 %v217, 4294901760
      %779 = vmatmul.mubr.f32.gmra.mxu0 %v778
      %v780 = vpop.f32.mrf.mxu0
      %v781 = vadd.f32 %v696, %v780
      %v782 = vpop.f32.mrf.mxu0
      %v783 = vadd.f32 %v698, %v782
      %784 = vdwg.mxu0
      %785 = vmatprep.subr.mxu0 0.0
      %786 = vmatpush1.msra.mxu0 0.0
      %787 = vmatprep.subr.mxu0 0.0
      %788 = vmatpush1.msra.mxu0 0.0
      %789 = vmatprep.subr.mxu0 0.0
      %790 = vmatpush1.msra.mxu0 0.0
      %791 = vmatprep.subr.mxu0 0.0
      %792 = vmatpush1.msra.mxu0 0.0
      %793 = vmatprep.subr.mxu0 0.0
      %794 = vmatpush1.msra.mxu0 0.0
      %795 = vmatprep.subr.mxu0 0.0
      %796 = vmatpush1.msra.mxu0 0.0
      %797 = vmatprep.subr.mxu0 0.0
      %798 = vmatpush1.msra.mxu0 0.0
      %799 = vmatprep.subr.mxu0 0.0
      %800 = vmatpush1.msra.mxu0 0.0
      %801 = vmatprep.subr.mxu0 0.0
      %802 = vmatpush1.msra.mxu0 0.0
      %803 = vmatprep.subr.mxu0 0.0
      %804 = vmatpush1.msra.mxu0 0.0
      %805 = vmatprep.subr.mxu0 0.0
      %806 = vmatpush1.msra.mxu0 0.0
      %807 = vmatprep.subr.mxu0 0.0
      %808 = vmatpush1.msra.mxu0 0.0
      %809 = vmatprep.subr.mxu0 0.0
      %810 = vmatpush1.msra.mxu0 0.0
      %811 = vmatprep.subr.mxu0 0.0
      %v812 = vand.u32 %v211, 4294901760
      %813 = vmatpush1.msra.mxu0 %v812
      %814 = vmatprep.subr.mxu0 0.0
      %v815 = vand.u32 %v208, 4294901760
      %816 = vmatpush1.msra.mxu0 %v815
      %817 = vmatprep.subr.mxu0 0.0
      %v818 = vand.u32 %v205, 4294901760
      %819 = vmatpush1.msra.mxu0 %v818
      %820 = vmatprep.subr.mxu0 0.0
      %821 = vmatpush2.msra.mxu0 0.0
      %822 = vmatprep.subr.mxu0 0.0
      %823 = vmatpush2.msra.mxu0 0.0
      %824 = vmatprep.subr.mxu0 0.0
      %825 = vmatpush2.msra.mxu0 0.0
      %826 = vmatprep.subr.mxu0 0.0
      %827 = vmatpush2.msra.mxu0 0.0
      %828 = vmatprep.subr.mxu0 0.0
      %829 = vmatpush2.msra.mxu0 0.0
      %830 = vmatprep.subr.mxu0 0.0
      %831 = vmatpush2.msra.mxu0 0.0
      %832 = vmatprep.subr.mxu0 0.0
      %833 = vmatpush2.msra.mxu0 0.0
      %834 = vmatprep.subr.mxu0 0.0
      %835 = vmatpush2.msra.mxu0 0.0
      %836 = vmatprep.subr.mxu0 0.0
      %837 = vmatpush2.msra.mxu0 0.0
      %838 = vmatprep.subr.mxu0 0.0
      %839 = vmatpush2.msra.mxu0 0.0
      %840 = vmatprep.subr.mxu0 0.0
      %841 = vmatpush2.msra.mxu0 0.0
      %842 = vmatprep.subr.mxu0 0.0
      %843 = vmatpush2.msra.mxu0 0.0
      %844 = vmatprep.subr.mxu0 0.0
      %845 = vmatpush2.msra.mxu0 0.0
      %846 = vmatprep.subr.mxu0 0.0
      %847 = vmatpush2.msra.mxu0 0.0
      %848 = vmatprep.subr.mxu0 0.0
      %849 = vmatpush2.msra.mxu0 0.0
      %850 = vmatprep.subr.mxu0 0.0
      %851 = vmatpush2.msra.mxu0 0.0
      %852 = vmatprep.mubr.f32.mxu0 0.0
      %v853 = vand.u32 %v214, 4294901760
      %v854 = vsub.f32 %v214, %v853
      %v855 = vand.u32 %v854, 4294901760
      %v856 = vsub.f32 %v854, %v855
      %v857 = vand.u32 %v856, 4294901760
      %858 = vmatmul.mubr.f32.gmra.mxu0 %v857
      %v859 = vpop.f32.mrf.mxu0
      %v860 = vadd.f32 0.0, %v859
      %v861 = vpop.f32.mrf.mxu0
      %862 = vmatprep.mubr.f32.mxu0 0.0
      %v863 = vand.u32 %v217, 4294901760
      %v864 = vsub.f32 %v217, %v863
      %v865 = vand.u32 %v864, 4294901760
      %v866 = vsub.f32 %v864, %v865
      %v867 = vand.u32 %v866, 4294901760
      %868 = vmatmul.mubr.f32.gmra.mxu0 %v867
      %v869 = vpop.f32.mrf.mxu0
      %v870 = vadd.f32 0.0, %v869
      %v871 = vpop.f32.mrf.mxu0
      %872 = vdwg.mxu0
      %873 = vmatprep.subr.mxu0 0.0
      %874 = vmatpush1.msra.mxu0 0.0
      %875 = vmatprep.subr.mxu0 0.0
      %876 = vmatpush1.msra.mxu0 0.0
      %877 = vmatprep.subr.mxu0 0.0
      %878 = vmatpush1.msra.mxu0 0.0
      %879 = vmatprep.subr.mxu0 0.0
      %880 = vmatpush1.msra.mxu0 0.0
      %881 = vmatprep.subr.mxu0 0.0
      %882 = vmatpush1.msra.mxu0 0.0
      %883 = vmatprep.subr.mxu0 0.0
      %884 = vmatpush1.msra.mxu0 0.0
      %885 = vmatprep.subr.mxu0 0.0
      %886 = vmatpush1.msra.mxu0 0.0
      %887 = vmatprep.subr.mxu0 0.0
      %888 = vmatpush1.msra.mxu0 0.0
      %889 = vmatprep.subr.mxu0 0.0
      %890 = vmatpush1.msra.mxu0 0.0
      %891 = vmatprep.subr.mxu0 0.0
      %892 = vmatpush1.msra.mxu0 0.0
      %893 = vmatprep.subr.mxu0 0.0
      %894 = vmatpush1.msra.mxu0 0.0
      %895 = vmatprep.subr.mxu0 0.0
      %896 = vmatpush1.msra.mxu0 0.0
      %897 = vmatprep.subr.mxu0 0.0
      %898 = vmatpush1.msra.mxu0 0.0
      %899 = vmatprep.subr.mxu0 0.0
      %v900 = vand.u32 %v211, 4294901760
      %v901 = vsub.f32 %v211, %v900
      %v902 = vand.u32 %v901, 4294901760
      %v903 = vsub.f32 %v901, %v902
      %v904 = vand.u32 %v903, 4294901760
      %905 = vmatpush1.msra.mxu0 %v904
      %906 = vmatprep.subr.mxu0 0.0
      %v907 = vand.u32 %v208, 4294901760
      %v908 = vsub.f32 %v208, %v907
      %v909 = vand.u32 %v908, 4294901760
      %v910 = vsub.f32 %v908, %v909
      %v911 = vand.u32 %v910, 4294901760
      %912 = vmatpush1.msra.mxu0 %v911
      %913 = vmatprep.subr.mxu0 0.0
      %v914 = vand.u32 %v205, 4294901760
      %v915 = vsub.f32 %v205, %v914
      %v916 = vand.u32 %v915, 4294901760
      %v917 = vsub.f32 %v915, %v916
      %v918 = vand.u32 %v917, 4294901760
      %919 = vmatpush1.msra.mxu0 %v918
      %920 = vmatprep.subr.mxu0 0.0
      %921 = vmatpush2.msra.mxu0 0.0
      %922 = vmatprep.subr.mxu0 0.0
      %923 = vmatpush2.msra.mxu0 0.0
      %924 = vmatprep.subr.mxu0 0.0
      %925 = vmatpush2.msra.mxu0 0.0
      %926 = vmatprep.subr.mxu0 0.0
      %927 = vmatpush2.msra.mxu0 0.0
      %928 = vmatprep.subr.mxu0 0.0
      %929 = vmatpush2.msra.mxu0 0.0
      %930 = vmatprep.subr.mxu0 0.0
      %931 = vmatpush2.msra.mxu0 0.0
      %932 = vmatprep.subr.mxu0 0.0
      %933 = vmatpush2.msra.mxu0 0.0
      %934 = vmatprep.subr.mxu0 0.0
      %935 = vmatpush2.msra.mxu0 0.0
      %936 = vmatprep.subr.mxu0 0.0
      %937 = vmatpush2.msra.mxu0 0.0
      %938 = vmatprep.subr.mxu0 0.0
      %939 = vmatpush2.msra.mxu0 0.0
      %940 = vmatprep.subr.mxu0 0.0
      %941 = vmatpush2.msra.mxu0 0.0
      %942 = vmatprep.subr.mxu0 0.0
      %943 = vmatpush2.msra.mxu0 0.0
      %944 = vmatprep.subr.mxu0 0.0
      %945 = vmatpush2.msra.mxu0 0.0
      %946 = vmatprep.subr.mxu0 0.0
      %947 = vmatpush2.msra.mxu0 0.0
      %948 = vmatprep.subr.mxu0 0.0
      %949 = vmatpush2.msra.mxu0 0.0
      %950 = vmatprep.subr.mxu0 0.0
      %951 = vmatpush2.msra.mxu0 0.0
      %952 = vmatprep.mubr.f32.mxu0 0.0
      %v953 = vand.u32 %v214, 4294901760
      %954 = vmatmul.mubr.f32.gmra.mxu0 %v953
      %v955 = vpop.f32.mrf.mxu0
      %v956 = vadd.f32 %v860, %v955
      %v957 = vpop.f32.mrf.mxu0
      %958 = vmatprep.mubr.f32.mxu0 0.0
      %v959 = vand.u32 %v217, 4294901760
      %960 = vmatmul.mubr.f32.gmra.mxu0 %v959
      %v961 = vpop.f32.mrf.mxu0
      %v962 = vadd.f32 %v870, %v961
      %v963 = vpop.f32.mrf.mxu0
      %964 = vdwg.mxu0
      %965 = vmatprep.subr.mxu0 0.0
      %966 = vmatpush1.msra.mxu0 0.0
      %967 = vmatprep.subr.mxu0 0.0
      %968 = vmatpush1.msra.mxu0 0.0
      %969 = vmatprep.subr.mxu0 0.0
      %970 = vmatpush1.msra.mxu0 0.0
      %971 = vmatprep.subr.mxu0 0.0
      %972 = vmatpush1.msra.mxu0 0.0
      %973 = vmatprep.subr.mxu0 0.0
      %974 = vmatpush1.msra.mxu0 0.0
      %975 = vmatprep.subr.mxu0 0.0
      %976 = vmatpush1.msra.mxu0 0.0
      %977 = vmatprep.subr.mxu0 0.0
      %978 = vmatpush1.msra.mxu0 0.0
      %979 = vmatprep.subr.mxu0 0.0
      %980 = vmatpush1.msra.mxu0 0.0
      %981 = vmatprep.subr.mxu0 0.0
      %982 = vmatpush1.msra.mxu0 0.0
      %983 = vmatprep.subr.mxu0 0.0
      %984 = vmatpush1.msra.mxu0 0.0
      %985 = vmatprep.subr.mxu0 0.0
      %986 = vmatpush1.msra.mxu0 0.0
      %987 = vmatprep.subr.mxu0 0.0
      %988 = vmatpush1.msra.mxu0 0.0
      %989 = vmatprep.subr.mxu0 0.0
      %990 = vmatpush1.msra.mxu0 0.0
      %991 = vmatprep.subr.mxu0 0.0
      %v992 = vand.u32 %v211, 4294901760
      %v993 = vsub.f32 %v211, %v992
      %994 = vmatpush1.msra.mxu0 %v993
      %995 = vmatprep.subr.mxu0 0.0
      %v996 = vand.u32 %v208, 4294901760
      %v997 = vsub.f32 %v208, %v996
      %998 = vmatpush1.msra.mxu0 %v997
      %999 = vmatprep.subr.mxu0 0.0
      %v1000 = vand.u32 %v205, 4294901760
      %v1001 = vsub.f32 %v205, %v1000
      %1002 = vmatpush1.msra.mxu0 %v1001
      %1003 = vmatprep.subr.mxu0 0.0
      %1004 = vmatpush2.msra.mxu0 0.0
      %1005 = vmatprep.subr.mxu0 0.0
      %1006 = vmatpush2.msra.mxu0 0.0
      %1007 = vmatprep.subr.mxu0 0.0
      %1008 = vmatpush2.msra.mxu0 0.0
      %1009 = vmatprep.subr.mxu0 0.0
      %1010 = vmatpush2.msra.mxu0 0.0
      %1011 = vmatprep.subr.mxu0 0.0
      %1012 = vmatpush2.msra.mxu0 0.0
      %1013 = vmatprep.subr.mxu0 0.0
      %1014 = vmatpush2.msra.mxu0 0.0
      %1015 = vmatprep.subr.mxu0 0.0
      %1016 = vmatpush2.msra.mxu0 0.0
      %1017 = vmatprep.subr.mxu0 0.0
      %1018 = vmatpush2.msra.mxu0 0.0
      %1019 = vmatprep.subr.mxu0 0.0
      %1020 = vmatpush2.msra.mxu0 0.0
      %1021 = vmatprep.subr.mxu0 0.0
      %1022 = vmatpush2.msra.mxu0 0.0
      %1023 = vmatprep.subr.mxu0 0.0
      %1024 = vmatpush2.msra.mxu0 0.0
      %1025 = vmatprep.subr.mxu0 0.0
      %1026 = vmatpush2.msra.mxu0 0.0
      %1027 = vmatprep.subr.mxu0 0.0
      %1028 = vmatpush2.msra.mxu0 0.0
      %1029 = vmatprep.subr.mxu0 0.0
      %1030 = vmatpush2.msra.mxu0 0.0
      %1031 = vmatprep.subr.mxu0 0.0
      %1032 = vmatpush2.msra.mxu0 0.0
      %1033 = vmatprep.subr.mxu0 0.0
      %1034 = vmatpush2.msra.mxu0 0.0
      %1035 = vmatprep.mubr.f32.mxu0 0.0
      %v1036 = vand.u32 %v214, 4294901760
      %v1037 = vsub.f32 %v214, %v1036
      %1038 = vmatmul.mubr.f32.gmra.mxu0 %v1037
      %v1039 = vpop.f32.mrf.mxu0
      %v1040 = vadd.f32 %v956, %v1039
      %v1041 = vpop.f32.mrf.mxu0
      %1042 = vmatprep.mubr.f32.mxu0 0.0
      %v1043 = vand.u32 %v217, 4294901760
      %v1044 = vsub.f32 %v217, %v1043
      %1045 = vmatmul.mubr.f32.gmra.mxu0 %v1044
      %v1046 = vpop.f32.mrf.mxu0
      %v1047 = vadd.f32 %v962, %v1046
      %v1048 = vpop.f32.mrf.mxu0
      %1049 = vdwg.mxu0
      %1050 = vmatprep.subr.mxu0 0.0
      %1051 = vmatpush1.msra.mxu0 0.0
      %1052 = vmatprep.subr.mxu0 0.0
      %1053 = vmatpush1.msra.mxu0 0.0
      %1054 = vmatprep.subr.mxu0 0.0
      %1055 = vmatpush1.msra.mxu0 0.0
      %1056 = vmatprep.subr.mxu0 0.0
      %1057 = vmatpush1.msra.mxu0 0.0
      %1058 = vmatprep.subr.mxu0 0.0
      %1059 = vmatpush1.msra.mxu0 0.0
      %1060 = vmatprep.subr.mxu0 0.0
      %1061 = vmatpush1.msra.mxu0 0.0
      %1062 = vmatprep.subr.mxu0 0.0
      %1063 = vmatpush1.msra.mxu0 0.0
      %1064 = vmatprep.subr.mxu0 0.0
      %1065 = vmatpush1.msra.mxu0 0.0
      %1066 = vmatprep.subr.mxu0 0.0
      %1067 = vmatpush1.msra.mxu0 0.0
      %1068 = vmatprep.subr.mxu0 0.0
      %1069 = vmatpush1.msra.mxu0 0.0
      %1070 = vmatprep.subr.mxu0 0.0
      %1071 = vmatpush1.msra.mxu0 0.0
      %1072 = vmatprep.subr.mxu0 0.0
      %1073 = vmatpush1.msra.mxu0 0.0
      %1074 = vmatprep.subr.mxu0 0.0
      %1075 = vmatpush1.msra.mxu0 0.0
      %1076 = vmatprep.subr.mxu0 0.0
      %v1077 = vand.u32 %v211, 4294901760
      %1078 = vmatpush1.msra.mxu0 %v1077
      %1079 = vmatprep.subr.mxu0 0.0
      %v1080 = vand.u32 %v208, 4294901760
      %1081 = vmatpush1.msra.mxu0 %v1080
      %1082 = vmatprep.subr.mxu0 0.0
      %v1083 = vand.u32 %v205, 4294901760
      %1084 = vmatpush1.msra.mxu0 %v1083
      %1085 = vmatprep.subr.mxu0 0.0
      %1086 = vmatpush2.msra.mxu0 0.0
      %1087 = vmatprep.subr.mxu0 0.0
      %1088 = vmatpush2.msra.mxu0 0.0
      %1089 = vmatprep.subr.mxu0 0.0
      %1090 = vmatpush2.msra.mxu0 0.0
      %1091 = vmatprep.subr.mxu0 0.0
      %1092 = vmatpush2.msra.mxu0 0.0
      %1093 = vmatprep.subr.mxu0 0.0
      %1094 = vmatpush2.msra.mxu0 0.0
      %1095 = vmatprep.subr.mxu0 0.0
      %1096 = vmatpush2.msra.mxu0 0.0
      %1097 = vmatprep.subr.mxu0 0.0
      %1098 = vmatpush2.msra.mxu0 0.0
      %1099 = vmatprep.subr.mxu0 0.0
      %1100 = vmatpush2.msra.mxu0 0.0
      %1101 = vmatprep.subr.mxu0 0.0
      %1102 = vmatpush2.msra.mxu0 0.0
      %1103 = vmatprep.subr.mxu0 0.0
      %1104 = vmatpush2.msra.mxu0 0.0
      %1105 = vmatprep.subr.mxu0 0.0
      %1106 = vmatpush2.msra.mxu0 0.0
      %1107 = vmatprep.subr.mxu0 0.0
      %1108 = vmatpush2.msra.mxu0 0.0
      %1109 = vmatprep.subr.mxu0 0.0
      %1110 = vmatpush2.msra.mxu0 0.0
      %1111 = vmatprep.subr.mxu0 0.0
      %1112 = vmatpush2.msra.mxu0 0.0
      %1113 = vmatprep.subr.mxu0 0.0
      %1114 = vmatpush2.msra.mxu0 0.0
      %1115 = vmatprep.subr.mxu0 0.0
      %1116 = vmatpush2.msra.mxu0 0.0
      %1117 = vmatprep.mubr.f32.mxu0 0.0
      %v1118 = vand.u32 %v214, 4294901760
      %v1119 = vsub.f32 %v214, %v1118
      %v1120 = vand.u32 %v1119, 4294901760
      %1121 = vmatmul.mubr.f32.gmra.mxu0 %v1120
      %v1122 = vpop.f32.mrf.mxu0
      %v1123 = vadd.f32 %v1040, %v1122
      %v1124 = vpop.f32.mrf.mxu0
      %1125 = vmatprep.mubr.f32.mxu0 0.0
      %v1126 = vand.u32 %v217, 4294901760
      %v1127 = vsub.f32 %v217, %v1126
      %v1128 = vand.u32 %v1127, 4294901760
      %1129 = vmatmul.mubr.f32.gmra.mxu0 %v1128
      %v1130 = vpop.f32.mrf.mxu0
      %v1131 = vadd.f32 %v1047, %v1130
      %v1132 = vpop.f32.mrf.mxu0
      %1133 = vdwg.mxu0
      %1134 = vmatprep.subr.mxu0 0.0
      %1135 = vmatpush1.msra.mxu0 0.0
      %1136 = vmatprep.subr.mxu0 0.0
      %1137 = vmatpush1.msra.mxu0 0.0
      %1138 = vmatprep.subr.mxu0 0.0
      %1139 = vmatpush1.msra.mxu0 0.0
      %1140 = vmatprep.subr.mxu0 0.0
      %1141 = vmatpush1.msra.mxu0 0.0
      %1142 = vmatprep.subr.mxu0 0.0
      %1143 = vmatpush1.msra.mxu0 0.0
      %1144 = vmatprep.subr.mxu0 0.0
      %1145 = vmatpush1.msra.mxu0 0.0
      %1146 = vmatprep.subr.mxu0 0.0
      %1147 = vmatpush1.msra.mxu0 0.0
      %1148 = vmatprep.subr.mxu0 0.0
      %1149 = vmatpush1.msra.mxu0 0.0
      %1150 = vmatprep.subr.mxu0 0.0
      %1151 = vmatpush1.msra.mxu0 0.0
      %1152 = vmatprep.subr.mxu0 0.0
      %1153 = vmatpush1.msra.mxu0 0.0
      %1154 = vmatprep.subr.mxu0 0.0
      %1155 = vmatpush1.msra.mxu0 0.0
      %1156 = vmatprep.subr.mxu0 0.0
      %1157 = vmatpush1.msra.mxu0 0.0
      %1158 = vmatprep.subr.mxu0 0.0
      %1159 = vmatpush1.msra.mxu0 0.0
      %1160 = vmatprep.subr.mxu0 0.0
      %v1161 = vand.u32 %v211, 4294901760
      %v1162 = vsub.f32 %v211, %v1161
      %v1163 = vand.u32 %v1162, 4294901760
      %1164 = vmatpush1.msra.mxu0 %v1163
      %1165 = vmatprep.subr.mxu0 0.0
      %v1166 = vand.u32 %v208, 4294901760
      %v1167 = vsub.f32 %v208, %v1166
      %v1168 = vand.u32 %v1167, 4294901760
      %1169 = vmatpush1.msra.mxu0 %v1168
      %1170 = vmatprep.subr.mxu0 0.0
      %v1171 = vand.u32 %v205, 4294901760
      %v1172 = vsub.f32 %v205, %v1171
      %v1173 = vand.u32 %v1172, 4294901760
      %1174 = vmatpush1.msra.mxu0 %v1173
      %1175 = vmatprep.subr.mxu0 0.0
      %1176 = vmatpush2.msra.mxu0 0.0
      %1177 = vmatprep.subr.mxu0 0.0
      %1178 = vmatpush2.msra.mxu0 0.0
      %1179 = vmatprep.subr.mxu0 0.0
      %1180 = vmatpush2.msra.mxu0 0.0
      %1181 = vmatprep.subr.mxu0 0.0
      %1182 = vmatpush2.msra.mxu0 0.0
      %1183 = vmatprep.subr.mxu0 0.0
      %1184 = vmatpush2.msra.mxu0 0.0
      %1185 = vmatprep.subr.mxu0 0.0
      %1186 = vmatpush2.msra.mxu0 0.0
      %1187 = vmatprep.subr.mxu0 0.0
      %1188 = vmatpush2.msra.mxu0 0.0
      %1189 = vmatprep.subr.mxu0 0.0
      %1190 = vmatpush2.msra.mxu0 0.0
      %1191 = vmatprep.subr.mxu0 0.0
      %1192 = vmatpush2.msra.mxu0 0.0
      %1193 = vmatprep.subr.mxu0 0.0
      %1194 = vmatpush2.msra.mxu0 0.0
      %1195 = vmatprep.subr.mxu0 0.0
      %1196 = vmatpush2.msra.mxu0 0.0
      %1197 = vmatprep.subr.mxu0 0.0
      %1198 = vmatpush2.msra.mxu0 0.0
      %1199 = vmatprep.subr.mxu0 0.0
      %1200 = vmatpush2.msra.mxu0 0.0
      %1201 = vmatprep.subr.mxu0 0.0
      %1202 = vmatpush2.msra.mxu0 0.0
      %1203 = vmatprep.subr.mxu0 0.0
      %1204 = vmatpush2.msra.mxu0 0.0
      %1205 = vmatprep.subr.mxu0 0.0
      %1206 = vmatpush2.msra.mxu0 0.0
      %1207 = vmatprep.mubr.f32.mxu0 0.0
      %v1208 = vand.u32 %v214, 4294901760
      %1209 = vmatmul.mubr.f32.gmra.mxu0 %v1208
      %v1210 = vpop.f32.mrf.mxu0
      %v1211 = vadd.f32 %v1123, %v1210
      %v1212 = vpop.f32.mrf.mxu0
      %1213 = vmatprep.mubr.f32.mxu0 0.0
      %v1214 = vand.u32 %v217, 4294901760
      %1215 = vmatmul.mubr.f32.gmra.mxu0 %v1214
      %v1216 = vpop.f32.mrf.mxu0
      %v1217 = vadd.f32 %v1131, %v1216
      %v1218 = vpop.f32.mrf.mxu0
      %1219 = vdwg.mxu0
      %1220 = vmatprep.subr.mxu0 0.0
      %1221 = vmatpush1.msra.mxu0 0.0
      %1222 = vmatprep.subr.mxu0 0.0
      %1223 = vmatpush1.msra.mxu0 0.0
      %1224 = vmatprep.subr.mxu0 0.0
      %1225 = vmatpush1.msra.mxu0 0.0
      %1226 = vmatprep.subr.mxu0 0.0
      %1227 = vmatpush1.msra.mxu0 0.0
      %1228 = vmatprep.subr.mxu0 0.0
      %1229 = vmatpush1.msra.mxu0 0.0
      %1230 = vmatprep.subr.mxu0 0.0
      %1231 = vmatpush1.msra.mxu0 0.0
      %1232 = vmatprep.subr.mxu0 0.0
      %1233 = vmatpush1.msra.mxu0 0.0
      %1234 = vmatprep.subr.mxu0 0.0
      %1235 = vmatpush1.msra.mxu0 0.0
      %1236 = vmatprep.subr.mxu0 0.0
      %1237 = vmatpush1.msra.mxu0 0.0
      %1238 = vmatprep.subr.mxu0 0.0
      %1239 = vmatpush1.msra.mxu0 0.0
      %1240 = vmatprep.subr.mxu0 0.0
      %1241 = vmatpush1.msra.mxu0 0.0
      %1242 = vmatprep.subr.mxu0 0.0
      %1243 = vmatpush1.msra.mxu0 0.0
      %1244 = vmatprep.subr.mxu0 0.0
      %1245 = vmatpush1.msra.mxu0 0.0
      %1246 = vmatprep.subr.mxu0 0.0
      %v1247 = vand.u32 %v211, 4294901760
      %1248 = vmatpush1.msra.mxu0 %v1247
      %1249 = vmatprep.subr.mxu0 0.0
      %v1250 = vand.u32 %v208, 4294901760
      %1251 = vmatpush1.msra.mxu0 %v1250
      %1252 = vmatprep.subr.mxu0 0.0
      %v1253 = vand.u32 %v205, 4294901760
      %1254 = vmatpush1.msra.mxu0 %v1253
      %1255 = vmatprep.subr.mxu0 0.0
      %1256 = vmatpush2.msra.mxu0 0.0
      %1257 = vmatprep.subr.mxu0 0.0
      %1258 = vmatpush2.msra.mxu0 0.0
      %1259 = vmatprep.subr.mxu0 0.0
      %1260 = vmatpush2.msra.mxu0 0.0
      %1261 = vmatprep.subr.mxu0 0.0
      %1262 = vmatpush2.msra.mxu0 0.0
      %1263 = vmatprep.subr.mxu0 0.0
      %1264 = vmatpush2.msra.mxu0 0.0
      %1265 = vmatprep.subr.mxu0 0.0
      %1266 = vmatpush2.msra.mxu0 0.0
      %1267 = vmatprep.subr.mxu0 0.0
      %1268 = vmatpush2.msra.mxu0 0.0
      %1269 = vmatprep.subr.mxu0 0.0
      %1270 = vmatpush2.msra.mxu0 0.0
      %1271 = vmatprep.subr.mxu0 0.0
      %1272 = vmatpush2.msra.mxu0 0.0
      %1273 = vmatprep.subr.mxu0 0.0
      %1274 = vmatpush2.msra.mxu0 0.0
      %1275 = vmatprep.subr.mxu0 0.0
      %1276 = vmatpush2.msra.mxu0 0.0
      %1277 = vmatprep.subr.mxu0 0.0
      %1278 = vmatpush2.msra.mxu0 0.0
      %1279 = vmatprep.subr.mxu0 0.0
      %1280 = vmatpush2.msra.mxu0 0.0
      %1281 = vmatprep.subr.mxu0 0.0
      %1282 = vmatpush2.msra.mxu0 0.0
      %1283 = vmatprep.subr.mxu0 0.0
      %1284 = vmatpush2.msra.mxu0 0.0
      %1285 = vmatprep.subr.mxu0 0.0
      %1286 = vmatpush2.msra.mxu0 0.0
      %1287 = vmatprep.mubr.f32.mxu0 0.0
      %v1288 = vand.u32 %v214, 4294901760
      %1289 = vmatmul.mubr.f32.gmra.mxu0 %v1288
      %v1290 = vpop.f32.mrf.mxu0
      %v1291 = vadd.f32 %v1211, %v1290
      %v1292 = vpop.f32.mrf.mxu0
      %1293 = vmatprep.mubr.f32.mxu0 0.0
      %v1294 = vand.u32 %v217, 4294901760
      %1295 = vmatmul.mubr.f32.gmra.mxu0 %v1294
      %v1296 = vpop.f32.mrf.mxu0
      %v1297 = vadd.f32 %v1217, %v1296
      %v1298 = vpop.f32.mrf.mxu0
      %1299 = vdwg.mxu0
      %v1300 = vld [vmem:[%s186] sm:$0xff]
      %v1301 = vld [vmem:[%s186 + $0x8] sm:$0xff]
      %v1302 = vld [vmem:[%s186 + $0x10] sm:$0xff]
      %v1303 = vld [vmem:[%s186 + $0x18] sm:$0xff]
      %v1304 = vld [vmem:[%s186 + $0x20] sm:$0xff]
      %v1305 = vld [vmem:[%s186 + $0x28] sm:$0xff]
      %v1306 = vmul.f32 %v1300, %v774
      %v1307 = vmul.f32 %v1301, %v776
      %v1308 = vmul.f32 %v1302, %v1291
      %v1309 = vmul.f32 %v1303, %v781
      %v1310 = vmul.f32 %v1304, %v783
      %v1311 = vmul.f32 %v1305, %v1297
      %1312 = vst [vmem:[%s199] sm:$0xff] %v1306
      %1313 = vst [vmem:[%s199 + $0x8] sm:$0xff] %v1307
      %1314 = vst [vmem:[%s199 + $0x10] sm:$0xff] %v1308
      %1315 = vst [vmem:[%s199 + $0x18] sm:$0xff] %v1309
      %1316 = vst [vmem:[%s199 + $0x20] sm:$0xff] %v1310
      %1317 = vst [vmem:[%s199 + $0x28] sm:$0xff] %v1311
      %s1318 = smul.u32 2, %s14
      %p1319 = scmp.lt.s32.totalorder %s1318, 3
      %s1320 = scalar_select %p1319, %s1318, 3
      %s1321 = smul.addr %s1320, 3
      %s1322 = smul.addr %s1321, 8
      %s1323 = scalar_lea.vmem %s3, %s1322
      // Predicated region
      $region33: #{_lighting_surface.1} parent=31 // pred_check
        %p1324 = pneg %p105
      $region34: #{_lighting_surface.1} parent=31 // pred_check_branch
        %1326 = sbr.rel (%p1324) target = $region36
      $region35: #{_lighting_surface.1} parent=31 // pred_region
        %s1327 = smul.u32 2, %s14
      $region36: #{_lighting_surface.1} parent=31 // pred_fallthru
        _
    $region32: #{_lighting_surface.1} parent=5 // pred_fallthru
      _
    %p1328 = scmp.le.s32.totalorder 2, %s9
    // Predicated region
    $region37: #{_lighting_surface.1} parent=5 // pred_check
      %p1329 = pneg %p1328
    $region38: #{_lighting_surface.1} parent=5 // pred_check_branch
      %1331 = sbr.rel (%p1329) target = $region40
    $region39: #{_lighting_surface.1} parent=5 // pred_region
      %s1332 = ssub.s32 %s9, 2
      // Predicated region
      $region41: #{_lighting_surface.1} parent=39 // pred_check
        %p1333 = pneg %p111
      $region42: #{_lighting_surface.1} parent=39 // pred_check_branch
        %1335 = sbr.rel (%p1333) target = $region44
      $region43: #{_lighting_surface.1} parent=39 // pred_region
        %s1336 = smul.u32 2, %s15
        %p1337 = scmp.lt.s32.totalorder %s1336, 3
        %s1338 = scalar_select %p1337, %s1336, 3
        %s1339 = smul.addr %s1338, 3
        %s1340 = smul.addr %s1339, 8
        %s1341 = scalar_lea.vmem %s3, %s1340
      $region44: #{_lighting_surface.1} parent=39 // pred_fallthru
        _
    $region40: #{_lighting_surface.1} parent=5 // pred_fallthru
      _
  $region6: #{_lighting_surface.1} parent=0 // loop_footer
    %s13 = sadd.s32 1, %s9
  $region7: #{_lighting_surface.1} parent=0 // loop_footer_branch
    %8 = sbr.rel target = $region3
  $region8: #{_lighting_surface.1} parent=0 // loop_exit
    _

</llo_original>
